<compile_context>
chip_gen: v5e
topology: v5e:2x2
jax: 0.10.0
libtpu: 0.0.40
codegen_flags: <defaults>
</compile_context>

<pallas_src>
import functools

import jax
import jax.numpy as jnp
from jax.experimental import pallas as pl
from jax.experimental.pallas import tpu as pltpu

EPS = 1e-5  # PyTorch InstanceNorm2d default eps


# ----------------------------------------------------------------------------
# Kernel A: conv (as matmul) + InstanceNorm(affine) + ReLU, one image per grid step.
# ----------------------------------------------------------------------------
def _conv_in_relu_kernel(p_ref, w_ref, g_ref, b_ref, o_ref):
    # p_ref: (1, K, M) bf16 patches, w_ref: (Cout, K) bf16, g/b: (Cout, 1) f32,
    # o_ref: (1, Cout, M) f32.  M (spatial) is lane-dense.
    y = jnp.dot(w_ref[...], p_ref[0], preferred_element_type=jnp.float32)  # (Cout, M)
    mean = jnp.mean(y, axis=1, keepdims=True)                              # per-channel over M
    var = jnp.mean(jnp.square(y - mean), axis=1, keepdims=True)            # biased var (PyTorch IN)
    yn = (y - mean) * jax.lax.rsqrt(var + EPS)
    o_ref[0] = jnp.maximum(yn * g_ref[...] + b_ref[...], 0.0)


def conv_in_relu(patches, w_mat, gamma, beta):
    """patches: (N, K, M) bf16, w_mat: (Cout, K) bf16, gamma/beta: (Cout,) -> (N, Cout, M) f32."""
    N, K, M = patches.shape
    Cout = w_mat.shape[0]
    g = gamma.reshape(Cout, 1).astype(jnp.float32)
    b = beta.reshape(Cout, 1).astype(jnp.float32)
    ce = pl.CostEstimate(
        flops=2 * N * Cout * K * M,
        transcendentals=0,
        bytes_accessed=patches.size * 2 + w_mat.size * 2 + N * Cout * M * 4,
    )
    return pl.pallas_call(
        _conv_in_relu_kernel,
        out_shape=jax.ShapeDtypeStruct((N, Cout, M), jnp.float32),
        grid=(N,),
        in_specs=[
            pl.BlockSpec((1, K, M), lambda n: (n, 0, 0)),
            pl.BlockSpec((Cout, K), lambda n: (0, 0)),   # weight stays resident
            pl.BlockSpec((Cout, 1), lambda n: (0, 0)),
            pl.BlockSpec((Cout, 1), lambda n: (0, 0)),
        ],
        out_specs=pl.BlockSpec((1, Cout, M), lambda n: (n, 0, 0)),
        compiler_params=pltpu.CompilerParams(dimension_semantics=("parallel",)),
        cost_estimate=ce,
    )(patches, w_mat, g, b)


# ----------------------------------------------------------------------------
# Kernel B: whole attention tail + fuse.
#   dilated conv (wa1 pre-folded into its weights) -> IN+ReLU -> wa3 1x1 conv as a
#   VPU weighted sum over c8 channels -> sigmoid -> * features (+ features).
# ----------------------------------------------------------------------------
def _att_fuse_kernel(p_ref, we_ref, g_ref, b_ref, w3_ref, feat_ref, o_ref, *, addition, c8):
    # p_ref: (1, K, M) bf16, we_ref: (c8, K) bf16, g/b: (c8, 1) f32,
    # w3_ref: (Cout, c8) f32, feat_ref/o_ref: (1, Cout, M) f32.
    a = jnp.dot(we_ref[...], p_ref[0], preferred_element_type=jnp.float32)   # (c8, M)
    mean = jnp.mean(a, axis=1, keepdims=True)
    var = jnp.mean(jnp.square(a - mean), axis=1, keepdims=True)
    an = jnp.maximum((a - mean) * jax.lax.rsqrt(var + EPS) * g_ref[...] + b_ref[...], 0.0)

    # wa3 (1x1 conv, K = c8 = in_channels // 8, tiny) as a VPU weighted sum: keeps this
    # 2-wide contraction off the MXU entirely.
    logits = w3_ref[:, 0:1] * an[0:1, :]                 # (Cout, 1) * (1, M) -> (Cout, M)
    for k in range(1, c8):
        logits = logits + w3_ref[:, k:k + 1] * an[k:k + 1, :]

    f = feat_ref[0]
    out = jax.nn.sigmoid(logits) * f                     # sigmoid -> EUP slot
    if addition:
        out = out + f
    o_ref[0] = out


def att_fuse(patches, w_eff, gamma, beta, w3, features, addition):
    """patches: (N, K, M) bf16, w_eff: (c8, K) bf16, w3: (Cout, c8),
    features: (N, Cout, M) f32 -> (N, Cout, M) f32."""
    N, K, M = patches.shape
    c8 = w_eff.shape[0]
    Cout = w3.shape[0]
    g = gamma.reshape(c8, 1).astype(jnp.float32)
    b = beta.reshape(c8, 1).astype(jnp.float32)
    w3 = w3.astype(jnp.float32)
    ce = pl.CostEstimate(
        flops=2 * N * c8 * K * M + 2 * N * Cout * c8 * M + 2 * N * Cout * M,
        transcendentals=N * Cout * M,
        bytes_accessed=patches.size * 2 + w_eff.size * 2 + features.size * 4 + N * Cout * M * 4,
    )
    kern = functools.partial(_att_fuse_kernel, addition=addition, c8=c8)
    return pl.pallas_call(
        kern,
        out_shape=jax.ShapeDtypeStruct((N, Cout, M), jnp.float32),
        grid=(N,),
        in_specs=[
            pl.BlockSpec((1, K, M), lambda n: (n, 0, 0)),
            pl.BlockSpec((c8, K), lambda n: (0, 0)),
            pl.BlockSpec((c8, 1), lambda n: (0, 0)),
            pl.BlockSpec((c8, 1), lambda n: (0, 0)),
            pl.BlockSpec((Cout, c8), lambda n: (0, 0)),
            pl.BlockSpec((1, Cout, M), lambda n: (n, 0, 0)),
        ],
        out_specs=pl.BlockSpec((1, Cout, M), lambda n: (n, 0, 0)),
        compiler_params=pltpu.CompilerParams(dimension_semantics=("parallel",)),
        cost_estimate=ce,
    )(patches, w_eff, g, b, w3, features)


# ----------------------------------------------------------------------------
# Glue: channel-major im2col (patch rows K = tap-major, channel-fast; columns = Ho*Wo).
# ----------------------------------------------------------------------------
def extract_patches_cm(x, kh, kw, stride, dilation, padding):
    """x: (N, C, H, W) -> (N, kh*kw*C, Ho*Wo), Ho, Wo."""
    N, C, H, W = x.shape
    xp = jnp.pad(x, ((0, 0), (0, 0), (padding, padding), (padding, padding)))
    Ho = (H + 2 * padding - dilation * (kh - 1) - 1) // stride + 1
    Wo = (W + 2 * padding - dilation * (kw - 1) - 1) // stride + 1
    taps = []
    for i in range(kh):
        for j in range(kw):
            sl = xp[:, :,
                    i * dilation: i * dilation + (Ho - 1) * stride + 1: stride,
                    j * dilation: j * dilation + (Wo - 1) * stride + 1: stride]
            taps.append(sl.reshape(N, C, Ho * Wo))
    return jnp.concatenate(taps, axis=1), Ho, Wo


def _wmat(w):
    # PyTorch weight (Cout, Cin, kh, kw) -> (Cout, kh*kw*Cin), tap-major / channel-fast,
    # matching extract_patches_cm row order.
    cout, cin, kh, kw = w.shape
    return jnp.transpose(w, (0, 2, 3, 1)).reshape(cout, kh * kw * cin)


# ----------------------------------------------------------------------------
# FPA forward (wrapper).  Input / output are NCHW like the PyTorch module.
# ----------------------------------------------------------------------------
def fpa_forward(x, params, step, addition):
    x = x.astype(jnp.float32)
    N, Cin, H, W = x.shape
    Cout = params["w1"].shape[0]
    c8 = params["wa1"].shape[0]
    x_bf = x.astype(jnp.bfloat16)  # bf16 only on the MXU path

    # ---- main branch: [conv3x3 stride=step + IN + ReLU] -> [conv3x3 + IN + ReLU]
    p1, Ho, Wo = extract_patches_cm(x_bf, 3, 3, step, 1, 1)                 # (N, 9*Cin, M)
    m1 = conv_in_relu(p1, _wmat(params["w1"]).astype(jnp.bfloat16),
                      params["g1"], params["b1"])                           # (N, Cout, M) f32
    p2, _, _ = extract_patches_cm(
        m1.astype(jnp.bfloat16).reshape(N, Cout, Ho, Wo), 3, 3, 1, 1, 1)    # (N, 9*Cout, M)
    m2 = conv_in_relu(p2, _wmat(params["w2"]).astype(jnp.bfloat16),
                      params["g2"], params["b2"])                           # (N, Cout, M)

    # ---- attention branch: fold the 1x1 stride conv (wa1) into the dilated 3x3 weights
    #      so the dilated conv reads the strided input directly (no 2-wide MXU matmul,
    #      no extra HBM round trip).  wa3 + sigmoid + fuse happen inside kernel B.
    xs = x_bf[:, :, ::step, ::step]                                         # (N, Cin, Ho, Wo)
    wa1m = params["wa1"][:, :, 0, 0]                                        # (c8, Cin)
    wa2t = jnp.transpose(params["wa2"], (0, 2, 3, 1))                       # (c8, 3, 3, c8)
    w_eff = jnp.einsum("oijk,kc->oijc", wa2t, wa1m).reshape(c8, 9 * Cin)
    pa, _, _ = extract_patches_cm(xs, 3, 3, 1, 9, 9)                        # (N, 9*Cin, M)
    wa3m = params["wa3"][:, :, 0, 0]                                        # (Cout, c8)

    out = att_fuse(pa, w_eff.astype(jnp.bfloat16), params["ga"], params["ba"],
                   wa3m, m2, addition)                                      # (N, Cout, M)
    return out.reshape(N, Cout, Ho, Wo)                                     # already NCHW


# ----------------------------------------------------------------------------
# Pure-JAX f32 reference, faithful to the PyTorch module structure (for checking only).
# ----------------------------------------------------------------------------
def _conv_ref(x, w, stride, dilation, padding):
    return jax.lax.conv_general_dilated(
        x, w, window_strides=(stride, stride),
        padding=[(padding, padding), (padding, padding)],
        rhs_dilation=(dilation, dilation),
        dimension_numbers=("NCHW", "OIHW", "NCHW"))


def _in_relu_ref(x, g, b):
    mean = jnp.mean(x, axis=(2, 3), keepdims=True)
    var = jnp.mean(jnp.square(x - mean), axis=(2, 3), keepdims=True)
    y = (x - mean) * jax.lax.rsqrt(var + EPS)
    y = y * g.reshape(1, -1, 1, 1) + b.reshape(1, -1, 1, 1)
    return jnp.maximum(y, 0.0)


def fpa_ref(x, params, step, addition):
    x = x.astype(jnp.float32)
    m = _conv_ref(x, params["w1"], step, 1, 1)
    m = _in_relu_ref(m, params["g1"], params["b1"])
    m = _conv_ref(m, params["w2"], 1, 1, 1)
    m = _in_relu_ref(m, params["g2"], params["b2"])
    a = _conv_ref(x, params["wa1"], step, 1, 0)
    a = _conv_ref(a, params["wa2"], 1, 9, 9)
    a = _in_relu_ref(a, params["ga"], params["ba"])
    a = _conv_ref(a, params["wa3"], 1, 1, 0)
    a = jax.nn.sigmoid(a)
    return a * m + (m if addition else 0.0)


# ----------------------------------------------------------------------------
def init_params(key, in_channels, out_channels):
    c8 = in_channels // 8
    ks = jax.random.split(key, 11)
    nrm = lambda k, s: (0.1 * jax.random.normal(k, s)).astype(jnp.float32)
    return {
        # main branch (PyTorch OIHW conv weight layout)
        "w1": nrm(ks[0], (out_channels, in_channels, 3, 3)),
        "g1": 1.0 + nrm(ks[1], (out_channels,)),
        "b1": nrm(ks[2], (out_channels,)),
        "w2": nrm(ks[3], (out_channels, out_channels, 3, 3)),
        "g2": 1.0 + nrm(ks[4], (out_channels,)),
        "b2": nrm(ks[5], (out_channels,)),
        # attention branch
        "wa1": nrm(ks[6], (c8, in_channels, 1, 1)),
        "wa2": nrm(ks[7], (c8, c8, 3, 3)),
        "ga": 1.0 + nrm(ks[8], (c8,)),
        "ba": nrm(ks[9], (c8,)),
        "wa3": nrm(ks[10], (out_channels, c8, 1, 1)),
    }


if __name__ == "__main__":
    in_channels, out_channels, step, addition = 16, 16, 2, True
    N, H, W = 2, 16, 16

    key = jax.random.PRNGKey(0)
    kx, kp = jax.random.split(key)
    x = jax.random.normal(kx, (N, in_channels, H, W), dtype=jnp.float32)  # NCHW like PyTorch
    params = init_params(kp, in_channels, out_channels)

    out = jax.block_until_ready(fpa_forward(x, params, step, addition))
    ref = jax.block_until_ready(fpa_ref(x, params, step, addition))

    assert out.shape == (N, out_channels, H // step, W // step), out.shape
    err = float(jnp.max(jnp.abs(out - ref)))
    # Loose tolerance vs the pure-f32 reference: conv operands are fed to the MXU in bf16
    # (with f32 accumulation); all elementwise / normalization math stays f32.
    assert err < 5e-2, err
    print("KERNEL_OK")
</pallas_src>

<mosaic_0001>
module attributes {stable_mosaic.version = 11 : i64} {
  func.func @_conv_in_relu_kernel(%arg0: i32, %arg1: memref<1x144x64xbf16, #tpu.memory_space<vmem>>, %arg2: memref<16x144xbf16, #tpu.memory_space<vmem>>, %arg3: memref<16x1xf32, #tpu.memory_space<vmem>>, %arg4: memref<16x1xf32, #tpu.memory_space<vmem>>, %arg5: memref<1x16x64xf32, #tpu.memory_space<vmem>>) attributes {dimension_semantics = [#tpu.dimension_semantics<parallel>], iteration_bounds = array<i64: 2>, scalar_prefetch = 0 : i64, scratch_operands = 0 : i64, tpu.core_type = #tpu.core_type<tc>, window_params = [{transform_indices = @transform_0, window_bounds = array<i64: 1, 144, 64>}, {pipeline_mode = #tpu.pipeline_mode<synchronous>, transform_indices = @transform_1, window_bounds = array<i64: 16, 144>}, {pipeline_mode = #tpu.pipeline_mode<synchronous>, transform_indices = @transform_2, window_bounds = array<i64: 16, 1>}, {pipeline_mode = #tpu.pipeline_mode<synchronous>, transform_indices = @transform_3, window_bounds = array<i64: 16, 1>}, {transform_indices = @transform_4, window_bounds = array<i64: 1, 16, 64>}]} {
    %c0 = arith.constant 0 : index
    %c0_0 = arith.constant 0 : index
    %0 = vector.load %arg2[%c0, %c0_0] : memref<16x144xbf16, #tpu.memory_space<vmem>>, vector<16x144xbf16>
    %c0_1 = arith.constant 0 : index
    %c0_2 = arith.constant 0 : index
    %c0_3 = arith.constant 0 : index
    %1 = vector.load %arg1[%c0_1, %c0_2, %c0_3] : memref<1x144x64xbf16, #tpu.memory_space<vmem>>, vector<1x144x64xbf16>
    %2 = vector.shape_cast %1 : vector<1x144x64xbf16> to vector<144x64xbf16>
    %cst = arith.constant dense<0.000000e+00> : vector<16x64xf32>
    %3 = tpu.matmul %0, %2, %cst {dimension_numbers = #tpu.dot_dimension_numbers<[1], [0], [0], [1], [0, 0, 1, 1], [], []>} : vector<16x144xbf16>, vector<144x64xbf16>, vector<16x64xf32> -> vector<16x64xf32>
    %cst_4 = arith.constant dense<0.000000e+00> : vector<16xf32>
    %4 = vector.multi_reduction <add>, %3, %cst_4 [1] : vector<16x64xf32> to vector<16xf32>
    %5 = vector.shape_cast %4 : vector<16xf32> to vector<16x1xf32>
    %cst_5 = arith.constant 6.400000e+01 : f32
    %6 = vector.broadcast %cst_5 : f32 to vector<16x1xf32>
    %7 = arith.divf %5, %6 : vector<16x1xf32>
    %8 = vector.broadcast %7 : vector<16x1xf32> to vector<16x64xf32>
    %9 = arith.subf %3, %8 : vector<16x64xf32>
    %10 = arith.mulf %9, %9 : vector<16x64xf32>
    %cst_6 = arith.constant dense<0.000000e+00> : vector<16xf32>
    %11 = vector.multi_reduction <add>, %10, %cst_6 [1] : vector<16x64xf32> to vector<16xf32>
    %12 = vector.shape_cast %11 : vector<16xf32> to vector<16x1xf32>
    %cst_7 = arith.constant 6.400000e+01 : f32
    %13 = vector.broadcast %cst_7 : f32 to vector<16x1xf32>
    %14 = arith.divf %12, %13 : vector<16x1xf32>
    %15 = vector.broadcast %7 : vector<16x1xf32> to vector<16x64xf32>
    %16 = arith.subf %3, %15 : vector<16x64xf32>
    %cst_8 = arith.constant 9.99999974E-6 : f32
    %17 = vector.broadcast %cst_8 : f32 to vector<16x1xf32>
    %18 = arith.addf %14, %17 : vector<16x1xf32>
    %19 = math.rsqrt %18 : vector<16x1xf32>
    %20 = vector.broadcast %19 : vector<16x1xf32> to vector<16x64xf32>
    %21 = arith.mulf %16, %20 : vector<16x64xf32>
    %c0_9 = arith.constant 0 : index
    %c0_10 = arith.constant 0 : index
    %22 = vector.load %arg3[%c0_9, %c0_10] : memref<16x1xf32, #tpu.memory_space<vmem>>, vector<16x1xf32>
    %23 = vector.broadcast %22 : vector<16x1xf32> to vector<16x64xf32>
    %24 = arith.mulf %21, %23 : vector<16x64xf32>
    %c0_11 = arith.constant 0 : index
    %c0_12 = arith.constant 0 : index
    %25 = vector.load %arg4[%c0_11, %c0_12] : memref<16x1xf32, #tpu.memory_space<vmem>>, vector<16x1xf32>
    %26 = vector.broadcast %25 : vector<16x1xf32> to vector<16x64xf32>
    %27 = arith.addf %24, %26 : vector<16x64xf32>
    %cst_13 = arith.constant 0.000000e+00 : f32
    %28 = vector.broadcast %cst_13 : f32 to vector<16x64xf32>
    %29 = arith.maximumf %27, %28 : vector<16x64xf32>
    %c0_14 = arith.constant 0 : index
    %c0_15 = arith.constant 0 : index
    %c0_16 = arith.constant 0 : index
    %30 = vector.load %arg5[%c0_14, %c0_15, %c0_16] : memref<1x16x64xf32, #tpu.memory_space<vmem>>, vector<1x16x64xf32>
    %31 = vector.shape_cast %30 : vector<1x16x64xf32> to vector<16x64xf32>
    %32 = vector.shape_cast %29 : vector<16x64xf32> to vector<1x16x64xf32>
    tpu.vector_store %arg5[%c0_14, %c0_15, %c0_16], %32 {strides = array<i32>} : memref<1x16x64xf32, #tpu.memory_space<vmem>>, vector<1x16x64xf32>,
    return
  }
  func.func @transform_0(%arg0: i32) -> (i32, i32, i32) {
    %c0_i32 = arith.constant 0 : i32
    %c0_i32_0 = arith.constant 0 : i32
    %c0_i32_1 = arith.constant 0 : i32
    return %arg0, %c0_i32, %c0_i32_0 : i32, i32, i32
  }
  func.func @transform_1(%arg0: i32) -> (i32, i32) {
    %c0_i32 = arith.constant 0 : i32
    %c0_i32_0 = arith.constant 0 : i32
    %c0_i32_1 = arith.constant 0 : i32
    return %c0_i32, %c0_i32_0 : i32, i32
  }
  func.func @transform_2(%arg0: i32) -> (i32, i32) {
    %c0_i32 = arith.constant 0 : i32
    %c0_i32_0 = arith.constant 0 : i32
    %c0_i32_1 = arith.constant 0 : i32
    return %c0_i32, %c0_i32_0 : i32, i32
  }
  func.func @transform_3(%arg0: i32) -> (i32, i32) {
    %c0_i32 = arith.constant 0 : i32
    %c0_i32_0 = arith.constant 0 : i32
    %c0_i32_1 = arith.constant 0 : i32
    return %c0_i32, %c0_i32_0 : i32, i32
  }
  func.func @transform_4(%arg0: i32) -> (i32, i32, i32) {
    %c0_i32 = arith.constant 0 : i32
    %c0_i32_0 = arith.constant 0 : i32
    %c0_i32_1 = arith.constant 0 : i32
    return %arg0, %c0_i32, %c0_i32_0 : i32, i32, i32
  }
}

</mosaic_0001>

<llo_original>
// kernel: tpu_custom_call.1
$region0: #{tpu_custom_call.1}
  #allocation0 [shape = 'u32[]', space=smem, size = 0x4, offset = 0x4, fixed_abs, tag = 'smem constant byte address 0x4 - core index']
  #allocation1 [shape = 'u32[72,128]{1,0:T(1,128)}', space=vmem, size = 0x9000, scoped, tag = 'internal scratch']
  %s0 = inlined_call_operand.vmem [shape: bf16[2,144,64], index: 0, kind: input, shape index: {}]
  %s1 = inlined_call_operand.vmem [shape: bf16[16,144], index: 1, kind: input, shape index: {}]
  %s2 = inlined_call_operand.vmem [shape: f32[16,1], index: 2, kind: input, shape index: {}]
  %s3 = inlined_call_operand.vmem [shape: f32[16,1], index: 3, kind: input, shape index: {}]
  %s4 = inlined_call_operand.hbm [shape: f32[2,16,64], index: 4, kind: output, shape index: {}]
  %s5 = sld [smem:[#allocation0]]
  $region49: #{tpu_custom_call.1} parent=0
    _
  %s7 = ssub.s32 1, %s5
  %s8 = scalar_select 0, %s7, %s5
  $region1: #{tpu_custom_call.1} parent=0
    #allocation2 [shape = 'u8[16384]{0}', space=vmem, size = 0x4000, scoped, tag = 'output window, operand 0']
    #allocation3 [shape = 's32[2]{0}', space=sflag, size = 0x8, scoped, tag = 'scoped memory for tpu_custom_call.1']
    %9 = vsyncpa [#allocation3], 0
    %s10 = scalar_lea.sflag [#allocation3], 1
    %11 = vsyncpa %s10, 0
    loop: start=0, step=1, limit=4
    $region2: #{tpu_custom_call.1} parent=1 // loop_pre_header
      _
    $region3: #{tpu_custom_call.1} parent=1 // loop_header
      %s13 = sphi 0, %s17
      %p14 = scmp.ge.s32.totalorder %s13, 4
      %s23 = sphi 0, %s25
      %s26 = sphi 0, %s23
      %s27 = sphi 0, %s26
      %s43 = sphi 0, %s27
      %s47 = sphi 0, %s47
      %s49 = sphi 0, %s47
      %s50 = sphi 0, %s49
      %s64 = sphi 0, %s50
      %s68 = sphi 0, %s68
      %s70 = sphi 0, %s68
      %s71 = sphi 0, %s70
      %s85 = sphi 0, %s71
      %s89 = sphi 0, %s89
      %s91 = sphi 0, %s89
      %s92 = sphi 0, %s91
      %s106 = sphi 0, %s92
      %s112 = sphi 0, %s114
      %s115 = sphi 0, %s112
      %s116 = sphi 0, %s115
      %s132 = sphi 0, %s116
    $region4: #{tpu_custom_call.1} parent=1 // loop_header_branch
      %16 = sbr.rel (%p14) target = $region8
    $region5: #{tpu_custom_call.1} parent=1 // loop_body
      %s18 = ssub.s32 %s13, 1
      %s19 = ssub.s32 %s13, 2
      %s20 = sadd.s32 %s13, 1
      %s21 = ssub.s32 %s13, %s20
      %p22 = scmp.eq.s32.totalorder %s21, 0
      %s24 = sadd.s32 %s23, 1
      %s25 = scalar_select %p22, %s23, %s24
      %p28 = pneg %p22
      %p29 = scmp.eq.s32.totalorder %s13, 1
      %p30 = por %p28, %p29
      %p31 = scmp.ne.s32.totalorder %s23, %s26
      %p32 = scmp.eq.s32.totalorder %s13, 0
      %p33 = por %p31, %p32
      %p34 = scmp.ne.s32.totalorder %s23, %s26
      %p35 = scmp.eq.s32.totalorder %s18, 1
      %p36 = por %p34, %p35
      %p37 = scmp.ne.s32.totalorder %s26, %s27
      %p38 = scmp.eq.s32.totalorder %s18, 0
      %p39 = por %p37, %p38
      %p40 = scmp.ne.s32.totalorder %s26, %s27
      %p41 = scmp.eq.s32.totalorder %s19, 1
      %p42 = por %p40, %p41
      %p44 = scmp.ne.s32.totalorder %s27, %s43
      %p45 = scmp.eq.s32.totalorder %s19, 0
      %p46 = por %p44, %p45
      %s48 = sadd.s32 %s47, 1
      %p51 = scmp.eq.s32.totalorder %s13, 1
      %p52 = scmp.ne.s32.totalorder %s47, %s49
      %p53 = scmp.eq.s32.totalorder %s13, 0
      %p54 = por %p52, %p53
      %p55 = scmp.ne.s32.totalorder %s47, %s49
      %p56 = scmp.eq.s32.totalorder %s18, 1
      %p57 = por %p55, %p56
      %p58 = scmp.ne.s32.totalorder %s49, %s50
      %p59 = scmp.eq.s32.totalorder %s18, 0
      %p60 = por %p58, %p59
      %p61 = scmp.ne.s32.totalorder %s49, %s50
      %p62 = scmp.eq.s32.totalorder %s19, 1
      %p63 = por %p61, %p62
      %p65 = scmp.ne.s32.totalorder %s50, %s64
      %p66 = scmp.eq.s32.totalorder %s19, 0
      %p67 = por %p65, %p66
      %s69 = sadd.s32 %s68, 1
      %p72 = scmp.eq.s32.totalorder %s13, 1
      %p73 = scmp.ne.s32.totalorder %s68, %s70
      %p74 = scmp.eq.s32.totalorder %s13, 0
      %p75 = por %p73, %p74
      %p76 = scmp.ne.s32.totalorder %s68, %s70
      %p77 = scmp.eq.s32.totalorder %s18, 1
      %p78 = por %p76, %p77
      %p79 = scmp.ne.s32.totalorder %s70, %s71
      %p80 = scmp.eq.s32.totalorder %s18, 0
      %p81 = por %p79, %p80
      %p82 = scmp.ne.s32.totalorder %s70, %s71
      %p83 = scmp.eq.s32.totalorder %s19, 1
      %p84 = por %p82, %p83
      %p86 = scmp.ne.s32.totalorder %s71, %s85
      %p87 = scmp.eq.s32.totalorder %s19, 0
      %p88 = por %p86, %p87
      %s90 = sadd.s32 %s89, 1
      %p93 = scmp.eq.s32.totalorder %s13, 1
      %p94 = scmp.ne.s32.totalorder %s89, %s91
      %p95 = scmp.eq.s32.totalorder %s13, 0
      %p96 = por %p94, %p95
      %p97 = scmp.ne.s32.totalorder %s89, %s91
      %p98 = scmp.eq.s32.totalorder %s18, 1
      %p99 = por %p97, %p98
      %p100 = scmp.ne.s32.totalorder %s91, %s92
      %p101 = scmp.eq.s32.totalorder %s18, 0
      %p102 = por %p100, %p101
      %p103 = scmp.ne.s32.totalorder %s91, %s92
      %p104 = scmp.eq.s32.totalorder %s19, 1
      %p105 = por %p103, %p104
      %p107 = scmp.ne.s32.totalorder %s92, %s106
      %p108 = scmp.eq.s32.totalorder %s19, 0
      %p109 = por %p107, %p108
      %s110 = ssub.s32 %s13, %s20
      %p111 = scmp.eq.s32.totalorder %s110, 0
      %s113 = sadd.s32 %s112, 1
      %s114 = scalar_select %p111, %s112, %s113
      %p117 = pneg %p111
      %p118 = scmp.eq.s32.totalorder %s13, 1
      %p119 = por %p117, %p118
      %p120 = scmp.ne.s32.totalorder %s112, %s115
      %p121 = scmp.eq.s32.totalorder %s13, 0
      %p122 = por %p120, %p121
      %p123 = scmp.ne.s32.totalorder %s112, %s115
      %p124 = scmp.eq.s32.totalorder %s18, 1
      %p125 = por %p123, %p124
      %p126 = scmp.ne.s32.totalorder %s115, %s116
      %p127 = scmp.eq.s32.totalorder %s18, 0
      %p128 = por %p126, %p127
      %p129 = scmp.ne.s32.totalorder %s115, %s116
      %p130 = scmp.eq.s32.totalorder %s19, 1
      %p131 = por %p129, %p130
      %p133 = scmp.ne.s32.totalorder %s116, %s132
      %p134 = scmp.eq.s32.totalorder %s19, 0
      %p135 = por %p133, %p134
      %p136 = scmp.le.s32.totalorder 1, %s13
      %p137 = scmp.lt.s32.totalorder %s13, 3
      %p138 = pnand %p136, %p137
      %p139 = pneg %p138
      // Predicated region
      $region9: #{tpu_custom_call.1} parent=5 // pred_check
        _
      $region10: #{tpu_custom_call.1} parent=5 // pred_check_branch
        %141 = sbr.rel (%p138) target = $region12
      $region11: #{tpu_custom_call.1} parent=5 // pred_region
        %s142 = ssub.s32 %s13, 1
        // Predicated region
        $region13: #{tpu_custom_call.1} parent=11 // pred_check
          %p143 = pneg %p60
        $region14: #{tpu_custom_call.1} parent=11 // pred_check_branch
          %145 = sbr.rel (%p143) target = $region16
        $region15: #{tpu_custom_call.1} parent=11 // pred_region
          _
        $region16: #{tpu_custom_call.1} parent=11 // pred_fallthru
          _
        // Predicated region
        $region17: #{tpu_custom_call.1} parent=11 // pred_check
          %p146 = pneg %p81
        $region18: #{tpu_custom_call.1} parent=11 // pred_check_branch
          %148 = sbr.rel (%p146) target = $region20
        $region19: #{tpu_custom_call.1} parent=11 // pred_region
          _
        $region20: #{tpu_custom_call.1} parent=11 // pred_fallthru
          _
        // Predicated region
        $region21: #{tpu_custom_call.1} parent=11 // pred_check
          %p149 = pneg %p102
        $region22: #{tpu_custom_call.1} parent=11 // pred_check_branch
          %151 = sbr.rel (%p149) target = $region24
        $region23: #{tpu_custom_call.1} parent=11 // pred_region
          _
        $region24: #{tpu_custom_call.1} parent=11 // pred_fallthru
          _
      $region12: #{tpu_custom_call.1} parent=5 // pred_fallthru
        _
      %p152 = scmp.lt.s32.totalorder %s13, 2
      // Predicated region
      $region25: #{tpu_custom_call.1} parent=5 // pred_check
        %p153 = pneg %p152
      $region26: #{tpu_custom_call.1} parent=5 // pred_check_branch
        %155 = sbr.rel (%p153) target = $region28
      $region27: #{tpu_custom_call.1} parent=5 // pred_region
        // Predicated region
        $region29: #{tpu_custom_call.1} parent=27 // pred_check
          %p156 = pneg %p33
        $region30: #{tpu_custom_call.1} parent=27 // pred_check_branch
          %158 = sbr.rel (%p156) target = $region32
        $region31: #{tpu_custom_call.1} parent=27 // pred_region
          %p159 = scmp.lt.s32.totalorder %s13, 1
          %s160 = scalar_select %p159, %s13, 1
          %s161 = smul.addr %s160, 18
          %s162 = smul.addr %s161, 4
          %s163 = scalar_lea.vmem %s0, %s162
        $region32: #{tpu_custom_call.1} parent=27 // pred_fallthru
          _
      $region28: #{tpu_custom_call.1} parent=5 // pred_fallthru
        _
      %p164 = scmp.le.s32.totalorder 1, %s13
      %p165 = scmp.lt.s32.totalorder %s13, 3
      %p166 = pnand %p164, %p165
      %p167 = pneg %p166
      // Predicated region
      $region33: #{tpu_custom_call.1} parent=5 // pred_check
        _
      $region34: #{tpu_custom_call.1} parent=5 // pred_check_branch
        %169 = sbr.rel (%p166) target = $region36
      $region35: #{tpu_custom_call.1} parent=5 // pred_region
        %s170 = ssub.s32 %s13, 1
        %p171 = scmp.lt.s32.totalorder %s18, 1
        %s172 = scalar_select %p171, %s18, 1
        %s173 = smul.addr %s172, 18
        %s174 = smul.addr %s173, 4
        %s175 = scalar_lea.vmem %s0, %s174
        %p176 = pneg %p39
        %p177 = pneg %p36
        %p178 = pneg %p60
        %p179 = pneg %p57
        %p180 = pneg %p81
        %p181 = pneg %p78
        %p182 = pneg %p102
        %p183 = pneg %p99
        %p184 = pneg %p128
        %p185 = pneg %p125
        %s186 = sand.u32 %s115, 1
        %s187 = scalar_lea.sflag [#allocation3], %s186
        %s188 = sand.u32 %s115, 1
        %s189 = smul.addr %s188, 16
        %s190 = scalar_lea.vmem [#allocation2], %s189
        %p191 = scmp.lt.s32.totalorder %s18, 1
        %s192 = scalar_select %p191, %s18, 1
        %s193 = smul.addr %s192, 18
        %s194 = smul.addr %s193, 4
        %s195 = scalar_lea.vmem %s0, %s194
        %v197 = vld [vmem:[%s1] sm:$0xff]
        %v198 = vld [vmem:[%s1 + $0x8] sm:$0xff]
        %v199 = vld [vmem:[%s195] sm:$0xf]
        %v200 = vld [vmem:[%s195 + $0x4] sm:$0xf]
        %v201 = vld [vmem:[%s195 + $0x8] sm:$0xf]
        %v202 = vld [vmem:[%s195 + $0xc] sm:$0xf]
        %v203 = vld [vmem:[%s195 + $0x10] sm:$0xf]
        %v204 = vld [vmem:[%s195 + $0x14] sm:$0xf]
        %v205 = vld [vmem:[%s195 + $0x18] sm:$0xf]
        %v206 = vld [vmem:[%s195 + $0x1c] sm:$0xf]
        %v207 = vld [vmem:[%s195 + $0x20] sm:$0xf]
        %v208 = vld [vmem:[%s195 + $0x24] sm:$0xf]
        %v209 = vld [vmem:[%s195 + $0x28] sm:$0xf]
        %v210 = vld [vmem:[%s195 + $0x2c] sm:$0xf]
        %v211 = vld [vmem:[%s195 + $0x30] sm:$0xf]
        %v212 = vld [vmem:[%s195 + $0x34] sm:$0xf]
        %v213 = vld [vmem:[%s195 + $0x38] sm:$0xf]
        %v214 = vld [vmem:[%s195 + $0x3c] sm:$0xf]
        %v215 = vld [vmem:[%s195 + $0x40] sm:$0xf]
        %v216 = vld [vmem:[%s195 + $0x44] sm:$0xf]
        %v219 = vunpack.c.l.b16 %v197
        %v220 = vunpack.c.h.b16 %v197
        %v221 = vunpack.c.l.b16 %v198
        %v222 = vunpack.c.h.b16 %v198
        %v223 = vpack.c.b16 %v221, %v219
        %v224 = vpack.c.b16 %v222, %v220
        %v244 = vunpack.c.l.b16 %v199
        %v245 = vunpack.c.l.b16 %v200
        %v246 = vunpack.c.l.b16 %v201
        %v247 = vunpack.c.l.b16 %v202
        %v248 = vunpack.c.l.b16 %v203
        %v249 = vunpack.c.l.b16 %v204
        %v250 = vunpack.c.l.b16 %v205
        %v251 = vunpack.c.l.b16 %v206
        %v252 = vunpack.c.l.b16 %v207
        %v253 = vunpack.c.l.b16 %v208
        %v254 = vunpack.c.l.b16 %v209
        %v255 = vunpack.c.l.b16 %v210
        %v256 = vunpack.c.l.b16 %v211
        %v257 = vunpack.c.l.b16 %v212
        %v258 = vunpack.c.l.b16 %v213
        %v259 = vunpack.c.l.b16 %v214
        %v260 = vunpack.c.l.b16 %v215
        %v261 = vunpack.c.l.b16 %v216
        %v262 = vpack.c.b16 %v245, %v244
        %v263 = vpack.c.b16 %v247, %v246
        %v264 = vpack.c.b16 %v249, %v248
        %v265 = vpack.c.b16 %v251, %v250
        %v266 = vpack.c.b16 %v253, %v252
        %v267 = vpack.c.b16 %v255, %v254
        %v268 = vpack.c.b16 %v257, %v256
        %v269 = vpack.c.b16 %v259, %v258
        %v270 = vpack.c.b16 %v261, %v260
        %vm280 = vcmask 130048
        %v282 = vsel %vm280, %v224, 0
        %284 = vmatpush.bf16.msra.mxu0 %v269
        %285 = vmatpush.bf16.msra.mxu0 %v268
        %286 = vmatpush.bf16.msra.mxu0 %v267
        %287 = vmatpush.bf16.msra.mxu0 %v266
        %288 = vmatpush.bf16.msra.mxu0 %v265
        %289 = vmatpush.bf16.msra.mxu0 %v264
        %290 = vmatpush.bf16.msra.mxu0 %v263
        %291 = vmatpush.bf16.msra.mxu0 %v262
        %292 = vmatmul.bf16.gmra.mxu0 %v223
        %v293 = vpop.f32.mrf.mxu0
        %v294 = vadd.f32 0.0, %v293
        %v295 = vpop.f32.mrf.mxu0
        %v296 = vadd.f32 0.0, %v295
        %297 = vdwg.mxu0
        %298 = vmatpush.bf16.msra.mxu0 0
        %299 = vmatpush.bf16.msra.mxu0 0
        %300 = vmatpush.bf16.msra.mxu0 0
        %301 = vmatpush.bf16.msra.mxu0 0
        %302 = vmatpush.bf16.msra.mxu0 0
        %303 = vmatpush.bf16.msra.mxu0 0
        %304 = vmatpush.bf16.msra.mxu0 0
        %305 = vmatpush.bf16.msra.mxu0 %v270
        %306 = vmatmul.bf16.gmra.mxu0 %v282
        %v307 = vpop.f32.mrf.mxu0
        %v308 = vadd.f32 %v294, %v307
        %v309 = vpop.f32.mrf.mxu0
        %v310 = vadd.f32 %v296, %v309
        %311 = vdwg.mxu0
        %vm312 = vcmask 523264
        %v313 = vsel %vm312, %v308, 0.0
        %314 = vadd.xlane.f32.xlu0 %v313
        %v315 = vpop.xlane.xlu0 %314
        %v316 = vsel %vm312, %v310, 0.0
        %317 = vadd.xlane.f32.xlu0 %v316
        %v318 = vpop.xlane.xlu0 %317
        %v319 = vrcp.pop 64.0
        %v320 = vmul.f32 64.0, %v319
        %v321 = vsub.f32 1.0, %v320
        %v322 = vmul.f32 %v319, %v321
        %v323 = vadd.f32 %v319, %v322
        %vm324 = vweird.f32 %v319
        %v325 = vsel %vm324, %v319, %v323
        %v326 = vmul.f32 %v315, %v325
        %v327 = vmul.f32 %v318, %v325
        %v328 = vsub.f32 %v308, %v326
        %v329 = vsub.f32 %v310, %v327
        %v330 = vmul.f32 %v328, %v328
        %v331 = vmul.f32 %v329, %v329
        %v332 = vsel %vm312, %v330, 0.0
        %333 = vadd.xlane.f32.xlu0 %v332
        %v334 = vpop.xlane.xlu0 %333
        %v335 = vsel %vm312, %v331, 0.0
        %336 = vadd.xlane.f32.xlu0 %v335
        %v337 = vpop.xlane.xlu0 %336
        %v338 = vmul.f32 %v334, %v325
        %v339 = vmul.f32 %v337, %v325
        %v340 = vadd.f32 %v338, 1e-05
        %v341 = vadd.f32 %v339, 1e-05
        %v342 = vrsqrt.pop %v340
        %v343 = vmul.f32 %v342, %v340
        %v344 = vmul.f32 %v343, %v342
        %v345 = vmul.f32 0.5, %v344
        %v346 = vsub.f32 1.5, %v345
        %v347 = vmul.f32 %v342, %v346
        %vm348 = vweird.f32 %v340
        %vm349 = vweird.f32 %v342
        %vm350 = vmor %vm348, %vm349
        %v351 = vsel %vm350, %v342, %v347
        %v352 = vrsqrt.pop %v341
        %v353 = vmul.f32 %v352, %v341
        %v354 = vmul.f32 %v353, %v352
        %v355 = vmul.f32 0.5, %v354
        %v356 = vsub.f32 1.5, %v355
        %v357 = vmul.f32 %v352, %v356
        %vm358 = vweird.f32 %v341
        %vm359 = vweird.f32 %v352
        %vm360 = vmor %vm358, %vm359
        %v361 = vsel %vm360, %v352, %v357
        %v362 = vmul.f32 %v328, %v351
        %v363 = vmul.f32 %v329, %v361
        %v364 = vld [vmem:[%s2] sm:$0xff]
        %v365 = vld [vmem:[%s2 + $0x8] sm:$0xff]
        %367 = vset.pattern.permute.xlu0 0
        %368 = vperm.xlu0 %367, %v364
        %v369 = vpop.permute.xlu0 %368
        %372 = vset.pattern.permute.xlu0 0
        %373 = vperm.xlu0 %372, %v365
        %v374 = vpop.permute.xlu0 %373
        %v376 = vmul.f32 %v362, %v369
        %v377 = vmul.f32 %v363, %v374
        %v378 = vld [vmem:[%s3] sm:$0xff]
        %v379 = vld [vmem:[%s3 + $0x8] sm:$0xff]
        %381 = vset.pattern.permute.xlu0 0
        %382 = vperm.xlu0 %381, %v378
        %v383 = vpop.permute.xlu0 %382
        %386 = vset.pattern.permute.xlu0 0
        %387 = vperm.xlu0 %386, %v379
        %v388 = vpop.permute.xlu0 %387
        %v390 = vadd.f32 %v376, %v383
        %v391 = vadd.f32 %v377, %v388
        %v392 = vmax.f32 %v390, 0.0
        %v393 = vmax.f32 %v391, 0.0
        %394 = vst.msk [vmem:[%s190] sm:$0xff] %vm312, %v392
        %395 = vst.msk [vmem:[%s190 + $0x8] sm:$0xff] %vm312, %v393
        %s396 = sand.u32 %s115, 1
        %s397 = scalar_lea.sflag [#allocation3], %s396
        %s398 = sand.u32 %s115, 1
        %s399 = smul.addr %s398, 16
        %s400 = scalar_lea.vmem [#allocation2], %s399
        // Predicated region
        $region37: #{tpu_custom_call.1} parent=35 // pred_check
          %p401 = pneg %p125
        $region38: #{tpu_custom_call.1} parent=35 // pred_check_branch
          %403 = sbr.rel (%p401) target = $region40
        $region39: #{tpu_custom_call.1} parent=35 // pred_region
          %405 = vsyncadd %s397, 0
          %s406 = smul.addr %s18, 2
          %s407 = smul.addr %s406, 8
          %s408 = scalar_lea.hbm %s4, %s407
          %s409 = sshll.u32 %s400, 4
          %s410 = int_to_ptr.vmem [resolvable:$true] %s409
          %s411 = sshll.u32 %s408, 4
          %s412 = int_to_ptr.hbm [resolvable:$true] %s411
          %417 = dma.vmem_to_hbm [thread:$0]  %s410, 256, %s412, %s397, 128, 128, 8
        $region40: #{tpu_custom_call.1} parent=35 // pred_fallthru
          _
      $region36: #{tpu_custom_call.1} parent=5 // pred_fallthru
        _
      %p418 = scmp.le.s32.totalorder 2, %s13
      // Predicated region
      $region41: #{tpu_custom_call.1} parent=5 // pred_check
        %p419 = pneg %p418
      $region42: #{tpu_custom_call.1} parent=5 // pred_check_branch
        %421 = sbr.rel (%p419) target = $region44
      $region43: #{tpu_custom_call.1} parent=5 // pred_region
        %s422 = ssub.s32 %s13, 2
        // Predicated region
        $region45: #{tpu_custom_call.1} parent=43 // pred_check
          %p423 = pneg %p131
        $region46: #{tpu_custom_call.1} parent=43 // pred_check_branch
          %425 = sbr.rel (%p423) target = $region48
        $region47: #{tpu_custom_call.1} parent=43 // pred_region
          %s426 = sand.u32 %s116, 1
          %s427 = scalar_lea.sflag [#allocation3], %s426
          %s428 = sand.u32 %s116, 1
          %s429 = smul.addr %s428, 16
          %s430 = scalar_lea.vmem [#allocation2], %s429
          %432 = dma.done %s427, 256
        $region48: #{tpu_custom_call.1} parent=43 // pred_fallthru
          _
      $region44: #{tpu_custom_call.1} parent=5 // pred_fallthru
        _
    $region6: #{tpu_custom_call.1} parent=1 // loop_footer
      %s17 = sadd.s32 1, %s13
    $region7: #{tpu_custom_call.1} parent=1 // loop_footer_branch
      %12 = sbr.rel target = $region3
    $region8: #{tpu_custom_call.1} parent=1 // loop_exit
      _
    %433 = vsyncpa [#allocation3], 1
    %s434 = scalar_lea.sflag [#allocation3], 1
    %435 = vsyncpa %s434, 1

</llo_original>
